<compile_context>
chip_gen: v7x
topology: tpu7x:2x2x1
jax: 0.10.0
libtpu: 0.0.40
codegen_flags: <defaults>
</compile_context>

<pallas_src>
import functools

import jax
import jax.numpy as jnp
from jax.experimental import pallas as pl
from jax.experimental.pallas import tpu as pltpu


def conv_adapter_kernel(x_ref, dw_w_ref, dw_b_ref, pw_w_ref, pw_b_ref, beta_ref,
                        out_ref, *, H, W):
    """One batch element per grid step.

    x_ref    : (C, S)     input in channels-on-sublanes / spatial-on-lanes layout, S = H*W
    dw_w_ref : (C, 9)     depthwise 3x3 weights, column k = (kh*3 + kw)
    dw_b_ref : (C, 1)     depthwise bias
    pw_w_ref : (Cout, C)  pointwise weights, already scaled by alpha
    pw_b_ref : (Cout, 1)  pointwise bias,   already scaled by alpha
    beta_ref : (1,) SMEM  beta
    out_ref  : (Cout, S)
    """
    C, S = x_ref.shape
    Cout = out_ref.shape[0]

    x = x_ref[...]                                             # (C, S) f32

    # Lane-position iota -> per-lane (h, w) boundary masks (emulate zero padding).
    col = jax.lax.broadcasted_iota(jnp.int32, (C, S), 1)
    if (W & (W - 1)) == 0:                                     # W is a power of two
        wmod = jnp.bitwise_and(col, W - 1)
    else:
        wmod = jax.lax.rem(col, W)

    h_ok = {-1: col >= W,          0: None, 1: col < (H - 1) * W}
    w_ok = {-1: wmod >= 1,         0: None, 1: wmod < (W - 1)}

    # --- depthwise 3x3 conv (padding=1): 9 lane-rolled taps with per-channel weights ---
    acc = jnp.zeros((C, S), jnp.float32)
    for dh in (-1, 0, 1):
        for dw in (-1, 0, 1):
            delta = dh * W + dw                                # flattened-lane offset
            # tap[s] = x[s + delta]  -> roll by -delta (jnp.roll semantics), XLU slot.
            tap = x if delta == 0 else pltpu.roll(x, shift=(-delta) % S, axis=1)
            mask = h_ok[dh]
            if w_ok[dw] is not None:
                mask = w_ok[dw] if mask is None else (mask & w_ok[dw])
            if mask is not None:
                tap = jnp.where(mask, tap, 0.0)
            k = (dh + 1) * 3 + (dw + 1)
            acc = acc + tap * dw_w_ref[:, k:k + 1]             # (C,S) * (C,1) lane-bcast
    acc = acc + dw_b_ref[...]                                  # (C,1) lane-broadcast

    # --- ReLU ---
    acc = jnp.maximum(acc, 0.0)

    # --- pointwise 1x1 conv on the VPU (tiny C/Cout; alpha already folded in) ---
    # y[co, s] = sum_c pw[co, c] * acc[c, s]
    y = jnp.zeros((Cout, S), jnp.float32)
    for c in range(C):
        a_c = jnp.broadcast_to(acc[c:c + 1, :], (Cout, S))     # sublane broadcast
        y = y + pw_w_ref[:, c:c + 1] * a_c                     # (Cout,1) lane-broadcast
    y = y + pw_b_ref[...]                                      # (Cout,1)

    # --- adapter residual mix: (alpha*y_pw) + beta * residual  (alpha folded already) ---
    out_ref[...] = y + beta_ref[0] * x                         # lane-dense (Cout, S) store


def conv_adapter(x_nchw, dw_w, dw_b, pw_w, pw_b, alpha, beta):
    """x_nchw: (N, C, H, W) float32 ; returns (N, Cout, H, W) float32 (NCHW, like PyTorch)."""
    N, C, H, W = x_nchw.shape
    Cout = pw_w.shape[0]
    assert Cout == C, "residual add requires output_channels == input_channels"
    S = H * W

    # Glue: only free reshapes (NCHW stays NCHW, spatial flattened onto the lane axis).
    x = x_nchw.reshape(N, C, S).astype(jnp.float32)
    dw_w9 = dw_w.reshape(C, 9).astype(jnp.float32)                    # from (C,1,3,3)
    dw_b2 = dw_b.reshape(C, 1).astype(jnp.float32)
    # Fold alpha into the (tiny) pointwise weights/bias once.
    pw_mat = (alpha * pw_w.reshape(Cout, C)).astype(jnp.float32)      # from (Cout,C,1,1)
    pw_b2 = (alpha * pw_b).reshape(Cout, 1).astype(jnp.float32)
    beta_arr = jnp.reshape(jnp.asarray(beta, jnp.float32), (1,))

    kernel = functools.partial(conv_adapter_kernel, H=H, W=W)

    out = pl.pallas_call(
        kernel,
        out_shape=jax.ShapeDtypeStruct((N, Cout, S), jnp.float32),
        grid_spec=pltpu.PrefetchScalarGridSpec(
            num_scalar_prefetch=0,
            grid=(N,),
            in_specs=[
                pl.BlockSpec((None, C, S), lambda n: (n, 0, 0)),      # x (residual too)
                pl.BlockSpec((C, 9), lambda n: (0, 0)),               # depthwise weights
                pl.BlockSpec((C, 1), lambda n: (0, 0)),               # depthwise bias
                pl.BlockSpec((Cout, C), lambda n: (0, 0)),            # pointwise weights
                pl.BlockSpec((Cout, 1), lambda n: (0, 0)),            # pointwise bias
                pl.BlockSpec(memory_space=pltpu.MemorySpace.SMEM),    # beta scalar
            ],
            out_specs=pl.BlockSpec((None, Cout, S), lambda n: (n, 0, 0)),
        ),
        compiler_params=pltpu.CompilerParams(dimension_semantics=("parallel",)),
    )(x, dw_w9, dw_b2, pw_mat, pw_b2, beta_arr)

    return out.reshape(N, Cout, H, W)


def reference(x, dw_w, dw_b, pw_w, pw_b, alpha, beta):
    """Pure-JAX reference mirroring the PyTorch forward (NCHW)."""
    y = jax.lax.conv_general_dilated(
        x, dw_w, window_strides=(1, 1), padding=((1, 1), (1, 1)),
        dimension_numbers=("NCHW", "OIHW", "NCHW"),
        feature_group_count=x.shape[1],
        precision=jax.lax.Precision.HIGHEST)
    y = y + dw_b[None, :, None, None]
    y = jnp.maximum(y, 0.0)
    y = jax.lax.conv_general_dilated(
        y, pw_w, window_strides=(1, 1), padding="VALID",
        dimension_numbers=("NCHW", "OIHW", "NCHW"),
        precision=jax.lax.Precision.HIGHEST)
    y = y + pw_b[None, :, None, None]
    return alpha * y + beta * x


if __name__ == "__main__":
    # small shapes consistent with the module: batch=2, channels=8, spatial=16x16
    N, C, H, W = 2, 8, 16, 16
    Cout = C  # residual add requires matching channels

    key = jax.random.PRNGKey(0)
    k_x, k_dw, k_dwb, k_pw, k_pwb = jax.random.split(key, 5)

    x = jax.random.normal(k_x, (N, C, H, W), jnp.float32)
    dw_w = jax.random.normal(k_dw, (C, 1, 3, 3), jnp.float32) * 0.1   # depthwise (groups=C)
    dw_b = jax.random.normal(k_dwb, (C,), jnp.float32) * 0.05
    pw_w = jax.random.normal(k_pw, (Cout, C, 1, 1), jnp.float32) * 0.1
    pw_b = jax.random.normal(k_pwb, (Cout,), jnp.float32) * 0.05
    alpha, beta = 1.0, 0.1

    out = conv_adapter(x, dw_w, dw_b, pw_w, pw_b, alpha, beta)
    out = jax.block_until_ready(out)

    ref = reference(x, dw_w, dw_b, pw_w, pw_b, alpha, beta)
    assert out.shape == (N, Cout, H, W)
    assert jnp.allclose(out, ref, atol=1e-5, rtol=1e-5), "mismatch vs JAX reference"

    print("KERNEL_OK")
</pallas_src>

<mosaic_0001>
module attributes {stable_mosaic.version = 11 : i64} {
  func.func @conv_adapter_kernel(%arg0: i32, %arg1: memref<1x8x256xf32, #tpu.memory_space<vmem>>, %arg2: memref<8x9xf32, #tpu.memory_space<vmem>>, %arg3: memref<8x1xf32, #tpu.memory_space<vmem>>, %arg4: memref<8x8xf32, #tpu.memory_space<vmem>>, %arg5: memref<8x1xf32, #tpu.memory_space<vmem>>, %arg6: memref<1xf32, #tpu.memory_space<smem>>, %arg7: memref<1x8x256xf32, #tpu.memory_space<vmem>>) attributes {dimension_semantics = [#tpu.dimension_semantics<parallel>], iteration_bounds = array<i64: 2>, scalar_prefetch = 0 : i64, scratch_operands = 0 : i64, tpu.core_type = #tpu.core_type<tc>, window_params = [{transform_indices = @transform_0, window_bounds = array<i64: 1, 8, 256>}, {pipeline_mode = #tpu.pipeline_mode<synchronous>, transform_indices = @transform_1, window_bounds = array<i64: 8, 9>}, {pipeline_mode = #tpu.pipeline_mode<synchronous>, transform_indices = @transform_2, window_bounds = array<i64: 8, 1>}, {pipeline_mode = #tpu.pipeline_mode<synchronous>, transform_indices = @transform_3, window_bounds = array<i64: 8, 8>}, {pipeline_mode = #tpu.pipeline_mode<synchronous>, transform_indices = @transform_4, window_bounds = array<i64: 8, 1>}, {transform_indices = @transform_5, window_bounds = array<i64: 1>}, {transform_indices = @transform_6, window_bounds = array<i64: 1, 8, 256>}]} {
    %c0 = arith.constant 0 : index
    %c0_0 = arith.constant 0 : index
    %c0_1 = arith.constant 0 : index
    %0 = vector.load %arg1[%c0, %c0_0, %c0_1] : memref<1x8x256xf32, #tpu.memory_space<vmem>>, vector<1x8x256xf32>
    %1 = vector.shape_cast %0 : vector<1x8x256xf32> to vector<8x256xf32>
    %2 = tpu.iota {dimensions = array<i32: 1>} : vector<8x256xi32>
    %c15_i32 = arith.constant 15 : i32
    %3 = vector.broadcast %c15_i32 : i32 to vector<8x256xi32>
    %4 = arith.andi %2, %3 : vector<8x256xi32>
    %c16_i32 = arith.constant 16 : i32
    %5 = vector.broadcast %c16_i32 : i32 to vector<8x256xi32>
    %6 = arith.cmpi sge, %2, %5 : vector<8x256xi32>
    %c240_i32 = arith.constant 240 : i32
    %7 = vector.broadcast %c240_i32 : i32 to vector<8x256xi32>
    %8 = arith.cmpi slt, %2, %7 : vector<8x256xi32>
    %c1_i32 = arith.constant 1 : i32
    %9 = vector.broadcast %c1_i32 : i32 to vector<8x256xi32>
    %10 = arith.cmpi sge, %4, %9 : vector<8x256xi32>
    %c15_i32_2 = arith.constant 15 : i32
    %11 = vector.broadcast %c15_i32_2 : i32 to vector<8x256xi32>
    %12 = arith.cmpi slt, %4, %11 : vector<8x256xi32>
    %cst = arith.constant 0.000000e+00 : f32
    %13 = vector.broadcast %cst : f32 to vector<8x256xf32>
    %c17_i32 = arith.constant 17 : i32
    %14 = tpu.dynamic_rotate %1 by %c17_i32 dim 1 : vector<8x256xf32>, i32 -> vector<8x256xf32>
    %15 = arith.andi %6, %10 : vector<8x256xi1>
    %cst_3 = arith.constant 0.000000e+00 : f32
    %16 = vector.broadcast %cst_3 : f32 to vector<8x256xf32>
    %17 = arith.select %15, %14, %16 : vector<8x256xi1>, vector<8x256xf32>
    %c0_4 = arith.constant 0 : index
    %c0_5 = arith.constant 0 : index
    %18 = vector.load %arg2[%c0_4, %c0_5] : memref<8x9xf32, #tpu.memory_space<vmem>>, vector<8x1xf32>
    %19 = vector.broadcast %18 : vector<8x1xf32> to vector<8x256xf32>
    %20 = arith.mulf %17, %19 : vector<8x256xf32>
    %21 = arith.addf %13, %20 : vector<8x256xf32>
    %c16_i32_6 = arith.constant 16 : i32
    %22 = tpu.dynamic_rotate %1 by %c16_i32_6 dim 1 : vector<8x256xf32>, i32 -> vector<8x256xf32>
    %cst_7 = arith.constant 0.000000e+00 : f32
    %23 = vector.broadcast %cst_7 : f32 to vector<8x256xf32>
    %24 = arith.select %6, %22, %23 : vector<8x256xi1>, vector<8x256xf32>
    %c0_8 = arith.constant 0 : index
    %c1 = arith.constant 1 : index
    %25 = vector.load %arg2[%c0_8, %c1] : memref<8x9xf32, #tpu.memory_space<vmem>>, vector<8x1xf32>
    %26 = vector.broadcast %25 : vector<8x1xf32> to vector<8x256xf32>
    %27 = arith.mulf %24, %26 : vector<8x256xf32>
    %28 = arith.addf %21, %27 : vector<8x256xf32>
    %c15_i32_9 = arith.constant 15 : i32
    %29 = tpu.dynamic_rotate %1 by %c15_i32_9 dim 1 : vector<8x256xf32>, i32 -> vector<8x256xf32>
    %30 = arith.andi %6, %12 : vector<8x256xi1>
    %cst_10 = arith.constant 0.000000e+00 : f32
    %31 = vector.broadcast %cst_10 : f32 to vector<8x256xf32>
    %32 = arith.select %30, %29, %31 : vector<8x256xi1>, vector<8x256xf32>
    %c0_11 = arith.constant 0 : index
    %c2 = arith.constant 2 : index
    %33 = vector.load %arg2[%c0_11, %c2] : memref<8x9xf32, #tpu.memory_space<vmem>>, vector<8x1xf32>
    %34 = vector.broadcast %33 : vector<8x1xf32> to vector<8x256xf32>
    %35 = arith.mulf %32, %34 : vector<8x256xf32>
    %36 = arith.addf %28, %35 : vector<8x256xf32>
    %c1_i32_12 = arith.constant 1 : i32
    %37 = tpu.dynamic_rotate %1 by %c1_i32_12 dim 1 : vector<8x256xf32>, i32 -> vector<8x256xf32>
    %cst_13 = arith.constant 0.000000e+00 : f32
    %38 = vector.broadcast %cst_13 : f32 to vector<8x256xf32>
    %39 = arith.select %10, %37, %38 : vector<8x256xi1>, vector<8x256xf32>
    %c0_14 = arith.constant 0 : index
    %c3 = arith.constant 3 : index
    %40 = vector.load %arg2[%c0_14, %c3] : memref<8x9xf32, #tpu.memory_space<vmem>>, vector<8x1xf32>
    %41 = vector.broadcast %40 : vector<8x1xf32> to vector<8x256xf32>
    %42 = arith.mulf %39, %41 : vector<8x256xf32>
    %43 = arith.addf %36, %42 : vector<8x256xf32>
    %c0_15 = arith.constant 0 : index
    %c4 = arith.constant 4 : index
    %44 = vector.load %arg2[%c0_15, %c4] : memref<8x9xf32, #tpu.memory_space<vmem>>, vector<8x1xf32>
    %45 = vector.broadcast %44 : vector<8x1xf32> to vector<8x256xf32>
    %46 = arith.mulf %1, %45 : vector<8x256xf32>
    %47 = arith.addf %43, %46 : vector<8x256xf32>
    %c255_i32 = arith.constant 255 : i32
    %48 = tpu.dynamic_rotate %1 by %c255_i32 dim 1 : vector<8x256xf32>, i32 -> vector<8x256xf32>
    %cst_16 = arith.constant 0.000000e+00 : f32
    %49 = vector.broadcast %cst_16 : f32 to vector<8x256xf32>
    %50 = arith.select %12, %48, %49 : vector<8x256xi1>, vector<8x256xf32>
    %c0_17 = arith.constant 0 : index
    %c5 = arith.constant 5 : index
    %51 = vector.load %arg2[%c0_17, %c5] : memref<8x9xf32, #tpu.memory_space<vmem>>, vector<8x1xf32>
    %52 = vector.broadcast %51 : vector<8x1xf32> to vector<8x256xf32>
    %53 = arith.mulf %50, %52 : vector<8x256xf32>
    %54 = arith.addf %47, %53 : vector<8x256xf32>
    %c241_i32 = arith.constant 241 : i32
    %55 = tpu.dynamic_rotate %1 by %c241_i32 dim 1 : vector<8x256xf32>, i32 -> vector<8x256xf32>
    %56 = arith.andi %8, %10 : vector<8x256xi1>
    %cst_18 = arith.constant 0.000000e+00 : f32
    %57 = vector.broadcast %cst_18 : f32 to vector<8x256xf32>
    %58 = arith.select %56, %55, %57 : vector<8x256xi1>, vector<8x256xf32>
    %c0_19 = arith.constant 0 : index
    %c6 = arith.constant 6 : index
    %59 = vector.load %arg2[%c0_19, %c6] : memref<8x9xf32, #tpu.memory_space<vmem>>, vector<8x1xf32>
    %60 = vector.broadcast %59 : vector<8x1xf32> to vector<8x256xf32>
    %61 = arith.mulf %58, %60 : vector<8x256xf32>
    %62 = arith.addf %54, %61 : vector<8x256xf32>
    %c240_i32_20 = arith.constant 240 : i32
    %63 = tpu.dynamic_rotate %1 by %c240_i32_20 dim 1 : vector<8x256xf32>, i32 -> vector<8x256xf32>
    %cst_21 = arith.constant 0.000000e+00 : f32
    %64 = vector.broadcast %cst_21 : f32 to vector<8x256xf32>
    %65 = arith.select %8, %63, %64 : vector<8x256xi1>, vector<8x256xf32>
    %c0_22 = arith.constant 0 : index
    %c7 = arith.constant 7 : index
    %66 = vector.load %arg2[%c0_22, %c7] : memref<8x9xf32, #tpu.memory_space<vmem>>, vector<8x1xf32>
    %67 = vector.broadcast %66 : vector<8x1xf32> to vector<8x256xf32>
    %68 = arith.mulf %65, %67 : vector<8x256xf32>
    %69 = arith.addf %62, %68 : vector<8x256xf32>
    %c239_i32 = arith.constant 239 : i32
    %70 = tpu.dynamic_rotate %1 by %c239_i32 dim 1 : vector<8x256xf32>, i32 -> vector<8x256xf32>
    %71 = arith.andi %8, %12 : vector<8x256xi1>
    %cst_23 = arith.constant 0.000000e+00 : f32
    %72 = vector.broadcast %cst_23 : f32 to vector<8x256xf32>
    %73 = arith.select %71, %70, %72 : vector<8x256xi1>, vector<8x256xf32>
    %c0_24 = arith.constant 0 : index
    %c8 = arith.constant 8 : index
    %74 = vector.load %arg2[%c0_24, %c8] : memref<8x9xf32, #tpu.memory_space<vmem>>, vector<8x1xf32>
    %75 = vector.broadcast %74 : vector<8x1xf32> to vector<8x256xf32>
    %76 = arith.mulf %73, %75 : vector<8x256xf32>
    %77 = arith.addf %69, %76 : vector<8x256xf32>
    %c0_25 = arith.constant 0 : index
    %c0_26 = arith.constant 0 : index
    %78 = vector.load %arg3[%c0_25, %c0_26] : memref<8x1xf32, #tpu.memory_space<vmem>>, vector<8x1xf32>
    %79 = vector.broadcast %78 : vector<8x1xf32> to vector<8x256xf32>
    %80 = arith.addf %77, %79 : vector<8x256xf32>
    %cst_27 = arith.constant 0.000000e+00 : f32
    %81 = vector.broadcast %cst_27 : f32 to vector<8x256xf32>
    %82 = arith.maximumf %80, %81 : vector<8x256xf32>
    %cst_28 = arith.constant 0.000000e+00 : f32
    %83 = vector.broadcast %cst_28 : f32 to vector<8x256xf32>
    %84 = vector.extract_strided_slice %82 {offsets = [0, 0], sizes = [1, 256], strides = [1, 1]} : vector<8x256xf32> to vector<1x256xf32>
    %85 = vector.shape_cast %84 : vector<1x256xf32> to vector<1x256xf32>
    %86 = vector.broadcast %85 : vector<1x256xf32> to vector<8x256xf32>
    %c0_29 = arith.constant 0 : index
    %c0_30 = arith.constant 0 : index
    %87 = vector.load %arg4[%c0_29, %c0_30] : memref<8x8xf32, #tpu.memory_space<vmem>>, vector<8x1xf32>
    %88 = vector.broadcast %87 : vector<8x1xf32> to vector<8x256xf32>
    %89 = arith.mulf %88, %86 : vector<8x256xf32>
    %90 = arith.addf %83, %89 : vector<8x256xf32>
    %91 = vector.extract_strided_slice %82 {offsets = [1, 0], sizes = [1, 256], strides = [1, 1]} : vector<8x256xf32> to vector<1x256xf32>
    %92 = vector.shape_cast %91 : vector<1x256xf32> to vector<1x256xf32>
    %93 = vector.broadcast %92 : vector<1x256xf32> to vector<8x256xf32>
    %c0_31 = arith.constant 0 : index
    %c1_32 = arith.constant 1 : index
    %94 = vector.load %arg4[%c0_31, %c1_32] : memref<8x8xf32, #tpu.memory_space<vmem>>, vector<8x1xf32>
    %95 = vector.broadcast %94 : vector<8x1xf32> to vector<8x256xf32>
    %96 = arith.mulf %95, %93 : vector<8x256xf32>
    %97 = arith.addf %90, %96 : vector<8x256xf32>
    %98 = vector.extract_strided_slice %82 {offsets = [2, 0], sizes = [1, 256], strides = [1, 1]} : vector<8x256xf32> to vector<1x256xf32>
    %99 = vector.shape_cast %98 : vector<1x256xf32> to vector<1x256xf32>
    %100 = vector.broadcast %99 : vector<1x256xf32> to vector<8x256xf32>
    %c0_33 = arith.constant 0 : index
    %c2_34 = arith.constant 2 : index
    %101 = vector.load %arg4[%c0_33, %c2_34] : memref<8x8xf32, #tpu.memory_space<vmem>>, vector<8x1xf32>
    %102 = vector.broadcast %101 : vector<8x1xf32> to vector<8x256xf32>
    %103 = arith.mulf %102, %100 : vector<8x256xf32>
    %104 = arith.addf %97, %103 : vector<8x256xf32>
    %105 = vector.extract_strided_slice %82 {offsets = [3, 0], sizes = [1, 256], strides = [1, 1]} : vector<8x256xf32> to vector<1x256xf32>
    %106 = vector.shape_cast %105 : vector<1x256xf32> to vector<1x256xf32>
    %107 = vector.broadcast %106 : vector<1x256xf32> to vector<8x256xf32>
    %c0_35 = arith.constant 0 : index
    %c3_36 = arith.constant 3 : index
    %108 = vector.load %arg4[%c0_35, %c3_36] : memref<8x8xf32, #tpu.memory_space<vmem>>, vector<8x1xf32>
    %109 = vector.broadcast %108 : vector<8x1xf32> to vector<8x256xf32>
    %110 = arith.mulf %109, %107 : vector<8x256xf32>
    %111 = arith.addf %104, %110 : vector<8x256xf32>
    %112 = vector.extract_strided_slice %82 {offsets = [4, 0], sizes = [1, 256], strides = [1, 1]} : vector<8x256xf32> to vector<1x256xf32>
    %113 = vector.shape_cast %112 : vector<1x256xf32> to vector<1x256xf32>
    %114 = vector.broadcast %113 : vector<1x256xf32> to vector<8x256xf32>
    %c0_37 = arith.constant 0 : index
    %c4_38 = arith.constant 4 : index
    %115 = vector.load %arg4[%c0_37, %c4_38] : memref<8x8xf32, #tpu.memory_space<vmem>>, vector<8x1xf32>
    %116 = vector.broadcast %115 : vector<8x1xf32> to vector<8x256xf32>
    %117 = arith.mulf %116, %114 : vector<8x256xf32>
    %118 = arith.addf %111, %117 : vector<8x256xf32>
    %119 = vector.extract_strided_slice %82 {offsets = [5, 0], sizes = [1, 256], strides = [1, 1]} : vector<8x256xf32> to vector<1x256xf32>
    %120 = vector.shape_cast %119 : vector<1x256xf32> to vector<1x256xf32>
    %121 = vector.broadcast %120 : vector<1x256xf32> to vector<8x256xf32>
    %c0_39 = arith.constant 0 : index
    %c5_40 = arith.constant 5 : index
    %122 = vector.load %arg4[%c0_39, %c5_40] : memref<8x8xf32, #tpu.memory_space<vmem>>, vector<8x1xf32>
    %123 = vector.broadcast %122 : vector<8x1xf32> to vector<8x256xf32>
    %124 = arith.mulf %123, %121 : vector<8x256xf32>
    %125 = arith.addf %118, %124 : vector<8x256xf32>
    %126 = vector.extract_strided_slice %82 {offsets = [6, 0], sizes = [1, 256], strides = [1, 1]} : vector<8x256xf32> to vector<1x256xf32>
    %127 = vector.shape_cast %126 : vector<1x256xf32> to vector<1x256xf32>
    %128 = vector.broadcast %127 : vector<1x256xf32> to vector<8x256xf32>
    %c0_41 = arith.constant 0 : index
    %c6_42 = arith.constant 6 : index
    %129 = vector.load %arg4[%c0_41, %c6_42] : memref<8x8xf32, #tpu.memory_space<vmem>>, vector<8x1xf32>
    %130 = vector.broadcast %129 : vector<8x1xf32> to vector<8x256xf32>
    %131 = arith.mulf %130, %128 : vector<8x256xf32>
    %132 = arith.addf %125, %131 : vector<8x256xf32>
    %133 = vector.extract_strided_slice %82 {offsets = [7, 0], sizes = [1, 256], strides = [1, 1]} : vector<8x256xf32> to vector<1x256xf32>
    %134 = vector.shape_cast %133 : vector<1x256xf32> to vector<1x256xf32>
    %135 = vector.broadcast %134 : vector<1x256xf32> to vector<8x256xf32>
    %c0_43 = arith.constant 0 : index
    %c7_44 = arith.constant 7 : index
    %136 = vector.load %arg4[%c0_43, %c7_44] : memref<8x8xf32, #tpu.memory_space<vmem>>, vector<8x1xf32>
    %137 = vector.broadcast %136 : vector<8x1xf32> to vector<8x256xf32>
    %138 = arith.mulf %137, %135 : vector<8x256xf32>
    %139 = arith.addf %132, %138 : vector<8x256xf32>
    %c0_45 = arith.constant 0 : index
    %c0_46 = arith.constant 0 : index
    %140 = vector.load %arg5[%c0_45, %c0_46] : memref<8x1xf32, #tpu.memory_space<vmem>>, vector<8x1xf32>
    %141 = vector.broadcast %140 : vector<8x1xf32> to vector<8x256xf32>
    %142 = arith.addf %139, %141 : vector<8x256xf32>
    %c0_47 = arith.constant 0 : index
    %143 = memref.load %arg6[%c0_47] : memref<1xf32, #tpu.memory_space<smem>>
    %144 = vector.broadcast %143 : f32 to vector<8x256xf32>
    %145 = arith.mulf %144, %1 : vector<8x256xf32>
    %146 = arith.addf %142, %145 : vector<8x256xf32>
    %c0_48 = arith.constant 0 : index
    %c0_49 = arith.constant 0 : index
    %c0_50 = arith.constant 0 : index
    %147 = vector.load %arg7[%c0_48, %c0_49, %c0_50] : memref<1x8x256xf32, #tpu.memory_space<vmem>>, vector<1x8x256xf32>
    %148 = vector.shape_cast %147 : vector<1x8x256xf32> to vector<8x256xf32>
    %149 = vector.shape_cast %146 : vector<8x256xf32> to vector<1x8x256xf32>
    tpu.vector_store %arg7[%c0_48, %c0_49, %c0_50], %149 {strides = array<i32>} : memref<1x8x256xf32, #tpu.memory_space<vmem>>, vector<1x8x256xf32>,
    return
  }
  func.func @transform_0(%arg0: i32) -> (i32, i32, i32) {
    %c0_i32 = arith.constant 0 : i32
    %c0_i32_0 = arith.constant 0 : i32
    %c0_i32_1 = arith.constant 0 : i32
    return %arg0, %c0_i32, %c0_i32_0 : i32, i32, i32
  }
  func.func @transform_1(%arg0: i32) -> (i32, i32) {
    %c0_i32 = arith.constant 0 : i32
    %c0_i32_0 = arith.constant 0 : i32
    %c0_i32_1 = arith.constant 0 : i32
    return %c0_i32, %c0_i32_0 : i32, i32
  }
  func.func @transform_2(%arg0: i32) -> (i32, i32) {
    %c0_i32 = arith.constant 0 : i32
    %c0_i32_0 = arith.constant 0 : i32
    %c0_i32_1 = arith.constant 0 : i32
    return %c0_i32, %c0_i32_0 : i32, i32
  }
  func.func @transform_3(%arg0: i32) -> (i32, i32) {
    %c0_i32 = arith.constant 0 : i32
    %c0_i32_0 = arith.constant 0 : i32
    %c0_i32_1 = arith.constant 0 : i32
    return %c0_i32, %c0_i32_0 : i32, i32
  }
  func.func @transform_4(%arg0: i32) -> (i32, i32) {
    %c0_i32 = arith.constant 0 : i32
    %c0_i32_0 = arith.constant 0 : i32
    %c0_i32_1 = arith.constant 0 : i32
    return %c0_i32, %c0_i32_0 : i32, i32
  }
  func.func @transform_5(%arg0: i32) -> i32 {
    %c0_i32 = arith.constant 0 : i32
    %c0_i32_0 = arith.constant 0 : i32
    return %c0_i32 : i32
  }
  func.func @transform_6(%arg0: i32) -> (i32, i32, i32) {
    %c0_i32 = arith.constant 0 : i32
    %c0_i32_0 = arith.constant 0 : i32
    %c0_i32_1 = arith.constant 0 : i32
    return %arg0, %c0_i32, %c0_i32_0 : i32, i32, i32
  }
}

</mosaic_0001>

<llo_original>
// kernel: tpu_custom_call.1
$region0: #{tpu_custom_call.1}
  #allocation0 [shape = 'u32[]', space=smem, size = 0x4, offset = 0x4, fixed_abs, tag = 'smem constant byte address 0x4 - core index']
  #allocation1 [shape = 'u32[144,128]{1,0:T(1,128)}', space=vmem, size = 0x12000, scoped, tag = 'internal scratch']
  #allocation2 [shape = 'f32[1]{0:T(128)S(6)}', space=smem, size = 0x200, scoped, tag = 'scoped memory for tpu_custom_call.1']
  %s0 = inlined_call_operand.hbm [shape: f32[2,8,256], index: 0, kind: input, shape index: {}]
  %s1 = inlined_call_operand.vmem [shape: f32[8,9], index: 1, kind: input, shape index: {}]
  %s2 = inlined_call_operand.vmem [shape: f32[8,1], index: 2, kind: input, shape index: {}]
  %s3 = inlined_call_operand.vmem [shape: f32[8,8], index: 3, kind: input, shape index: {}]
  %s4 = inlined_call_operand.vmem [shape: f32[8,1], index: 4, kind: input, shape index: {}]
  %s5 = inlined_call_operand.<no memory space> [shape: f32[1], index: 5, kind: input, shape index: {}]
  %s6 = inlined_call_operand.hbm [shape: f32[2,8,256], index: 6, kind: output, shape index: {}]
  %s7 = sld [smem:[#allocation0]]
  $region61: #{tpu_custom_call.1} parent=0
    _
  %s9 = ssub.s32 1, %s7
  %s10 = scalar_select 0, %s9, %s7
  %11 = sst [smem:[#allocation2]] %s5
  $region1: #{tpu_custom_call.1} parent=0
    #allocation3 [shape = 'u8[16384]{0}', space=vmem, size = 0x4000, scoped, tag = 'input window, operand 0']
    #allocation4 [shape = 's32[2]{0}', space=sflag, size = 0x8, scoped, tag = 'scoped memory for tpu_custom_call.1']
    #allocation5 [shape = 's32[2]{0}', space=sflag, size = 0x8, scoped, tag = 'scoped memory for tpu_custom_call.1']
    #allocation6 [shape = 'u8[16384]{0}', space=vmem, size = 0x4000, scoped, tag = 'output window, operand 0']
    %12 = vsyncpa [#allocation4], 0
    %s13 = scalar_lea.sflag [#allocation4], 1
    %14 = vsyncpa %s13, 0
    %15 = vsyncpa [#allocation5], 0
    %s16 = scalar_lea.sflag [#allocation5], 1
    %17 = vsyncpa %s16, 0
    loop: start=0, step=1, limit=4
    $region2: #{tpu_custom_call.1} parent=1 // loop_pre_header
      _
    $region3: #{tpu_custom_call.1} parent=1 // loop_header
      %s19 = sphi 0, %s23
      %p20 = scmp.ge.s32.totalorder %s19, 4
      %s29 = sphi 0, %s31
      %s32 = sphi 0, %s29
      %s33 = sphi 0, %s32
      %s49 = sphi 0, %s33
      %s53 = sphi 0, %s53
      %s55 = sphi 0, %s53
      %s56 = sphi 0, %s55
      %s70 = sphi 0, %s56
      %s74 = sphi 0, %s74
      %s76 = sphi 0, %s74
      %s77 = sphi 0, %s76
      %s91 = sphi 0, %s77
      %s95 = sphi 0, %s95
      %s97 = sphi 0, %s95
      %s98 = sphi 0, %s97
      %s112 = sphi 0, %s98
      %s116 = sphi 0, %s116
      %s118 = sphi 0, %s116
      %s119 = sphi 0, %s118
      %s133 = sphi 0, %s119
      %s137 = sphi 0, %s137
      %s139 = sphi 0, %s137
      %s140 = sphi 0, %s139
      %s154 = sphi 0, %s140
      %s160 = sphi 0, %s162
      %s163 = sphi 0, %s160
      %s164 = sphi 0, %s163
      %s180 = sphi 0, %s164
    $region4: #{tpu_custom_call.1} parent=1 // loop_header_branch
      %22 = sbr.rel (%p20) target = $region8
    $region5: #{tpu_custom_call.1} parent=1 // loop_body
      %s24 = ssub.s32 %s19, 1
      %s25 = ssub.s32 %s19, 2
      %s26 = sadd.s32 %s19, 1
      %s27 = ssub.s32 %s19, %s26
      %p28 = scmp.eq.s32.totalorder %s27, 0
      %s30 = sadd.s32 %s29, 1
      %s31 = scalar_select %p28, %s29, %s30
      %p34 = pneg %p28
      %p35 = scmp.eq.s32.totalorder %s19, 1
      %p36 = por %p34, %p35
      %p37 = scmp.ne.s32.totalorder %s29, %s32
      %p38 = scmp.eq.s32.totalorder %s19, 0
      %p39 = por %p37, %p38
      %p40 = scmp.ne.s32.totalorder %s29, %s32
      %p41 = scmp.eq.s32.totalorder %s24, 1
      %p42 = por %p40, %p41
      %p43 = scmp.ne.s32.totalorder %s32, %s33
      %p44 = scmp.eq.s32.totalorder %s24, 0
      %p45 = por %p43, %p44
      %p46 = scmp.ne.s32.totalorder %s32, %s33
      %p47 = scmp.eq.s32.totalorder %s25, 1
      %p48 = por %p46, %p47
      %p50 = scmp.ne.s32.totalorder %s33, %s49
      %p51 = scmp.eq.s32.totalorder %s25, 0
      %p52 = por %p50, %p51
      %s54 = sadd.s32 %s53, 1
      %p57 = scmp.eq.s32.totalorder %s19, 1
      %p58 = scmp.ne.s32.totalorder %s53, %s55
      %p59 = scmp.eq.s32.totalorder %s19, 0
      %p60 = por %p58, %p59
      %p61 = scmp.ne.s32.totalorder %s53, %s55
      %p62 = scmp.eq.s32.totalorder %s24, 1
      %p63 = por %p61, %p62
      %p64 = scmp.ne.s32.totalorder %s55, %s56
      %p65 = scmp.eq.s32.totalorder %s24, 0
      %p66 = por %p64, %p65
      %p67 = scmp.ne.s32.totalorder %s55, %s56
      %p68 = scmp.eq.s32.totalorder %s25, 1
      %p69 = por %p67, %p68
      %p71 = scmp.ne.s32.totalorder %s56, %s70
      %p72 = scmp.eq.s32.totalorder %s25, 0
      %p73 = por %p71, %p72
      %s75 = sadd.s32 %s74, 1
      %p78 = scmp.eq.s32.totalorder %s19, 1
      %p79 = scmp.ne.s32.totalorder %s74, %s76
      %p80 = scmp.eq.s32.totalorder %s19, 0
      %p81 = por %p79, %p80
      %p82 = scmp.ne.s32.totalorder %s74, %s76
      %p83 = scmp.eq.s32.totalorder %s24, 1
      %p84 = por %p82, %p83
      %p85 = scmp.ne.s32.totalorder %s76, %s77
      %p86 = scmp.eq.s32.totalorder %s24, 0
      %p87 = por %p85, %p86
      %p88 = scmp.ne.s32.totalorder %s76, %s77
      %p89 = scmp.eq.s32.totalorder %s25, 1
      %p90 = por %p88, %p89
      %p92 = scmp.ne.s32.totalorder %s77, %s91
      %p93 = scmp.eq.s32.totalorder %s25, 0
      %p94 = por %p92, %p93
      %s96 = sadd.s32 %s95, 1
      %p99 = scmp.eq.s32.totalorder %s19, 1
      %p100 = scmp.ne.s32.totalorder %s95, %s97
      %p101 = scmp.eq.s32.totalorder %s19, 0
      %p102 = por %p100, %p101
      %p103 = scmp.ne.s32.totalorder %s95, %s97
      %p104 = scmp.eq.s32.totalorder %s24, 1
      %p105 = por %p103, %p104
      %p106 = scmp.ne.s32.totalorder %s97, %s98
      %p107 = scmp.eq.s32.totalorder %s24, 0
      %p108 = por %p106, %p107
      %p109 = scmp.ne.s32.totalorder %s97, %s98
      %p110 = scmp.eq.s32.totalorder %s25, 1
      %p111 = por %p109, %p110
      %p113 = scmp.ne.s32.totalorder %s98, %s112
      %p114 = scmp.eq.s32.totalorder %s25, 0
      %p115 = por %p113, %p114
      %s117 = sadd.s32 %s116, 1
      %p120 = scmp.eq.s32.totalorder %s19, 1
      %p121 = scmp.ne.s32.totalorder %s116, %s118
      %p122 = scmp.eq.s32.totalorder %s19, 0
      %p123 = por %p121, %p122
      %p124 = scmp.ne.s32.totalorder %s116, %s118
      %p125 = scmp.eq.s32.totalorder %s24, 1
      %p126 = por %p124, %p125
      %p127 = scmp.ne.s32.totalorder %s118, %s119
      %p128 = scmp.eq.s32.totalorder %s24, 0
      %p129 = por %p127, %p128
      %p130 = scmp.ne.s32.totalorder %s118, %s119
      %p131 = scmp.eq.s32.totalorder %s25, 1
      %p132 = por %p130, %p131
      %p134 = scmp.ne.s32.totalorder %s119, %s133
      %p135 = scmp.eq.s32.totalorder %s25, 0
      %p136 = por %p134, %p135
      %s138 = sadd.s32 %s137, 1
      %p141 = scmp.eq.s32.totalorder %s19, 1
      %p142 = scmp.ne.s32.totalorder %s137, %s139
      %p143 = scmp.eq.s32.totalorder %s19, 0
      %p144 = por %p142, %p143
      %p145 = scmp.ne.s32.totalorder %s137, %s139
      %p146 = scmp.eq.s32.totalorder %s24, 1
      %p147 = por %p145, %p146
      %p148 = scmp.ne.s32.totalorder %s139, %s140
      %p149 = scmp.eq.s32.totalorder %s24, 0
      %p150 = por %p148, %p149
      %p151 = scmp.ne.s32.totalorder %s139, %s140
      %p152 = scmp.eq.s32.totalorder %s25, 1
      %p153 = por %p151, %p152
      %p155 = scmp.ne.s32.totalorder %s140, %s154
      %p156 = scmp.eq.s32.totalorder %s25, 0
      %p157 = por %p155, %p156
      %s158 = ssub.s32 %s19, %s26
      %p159 = scmp.eq.s32.totalorder %s158, 0
      %s161 = sadd.s32 %s160, 1
      %s162 = scalar_select %p159, %s160, %s161
      %p165 = pneg %p159
      %p166 = scmp.eq.s32.totalorder %s19, 1
      %p167 = por %p165, %p166
      %p168 = scmp.ne.s32.totalorder %s160, %s163
      %p169 = scmp.eq.s32.totalorder %s19, 0
      %p170 = por %p168, %p169
      %p171 = scmp.ne.s32.totalorder %s160, %s163
      %p172 = scmp.eq.s32.totalorder %s24, 1
      %p173 = por %p171, %p172
      %p174 = scmp.ne.s32.totalorder %s163, %s164
      %p175 = scmp.eq.s32.totalorder %s24, 0
      %p176 = por %p174, %p175
      %p177 = scmp.ne.s32.totalorder %s163, %s164
      %p178 = scmp.eq.s32.totalorder %s25, 1
      %p179 = por %p177, %p178
      %p181 = scmp.ne.s32.totalorder %s164, %s180
      %p182 = scmp.eq.s32.totalorder %s25, 0
      %p183 = por %p181, %p182
      %p184 = scmp.le.s32.totalorder 1, %s19
      %p185 = scmp.lt.s32.totalorder %s19, 3
      %p186 = pnand %p184, %p185
      %p187 = pneg %p186
      // Predicated region
      $region9: #{tpu_custom_call.1} parent=5 // pred_check
        _
      $region10: #{tpu_custom_call.1} parent=5 // pred_check_branch
        %189 = sbr.rel (%p186) target = $region12
      $region11: #{tpu_custom_call.1} parent=5 // pred_region
        %s190 = ssub.s32 %s19, 1
        // Predicated region
        $region13: #{tpu_custom_call.1} parent=11 // pred_check
          %p191 = pneg %p66
        $region14: #{tpu_custom_call.1} parent=11 // pred_check_branch
          %193 = sbr.rel (%p191) target = $region16
        $region15: #{tpu_custom_call.1} parent=11 // pred_region
          _
        $region16: #{tpu_custom_call.1} parent=11 // pred_fallthru
          _
        // Predicated region
        $region17: #{tpu_custom_call.1} parent=11 // pred_check
          %p194 = pneg %p87
        $region18: #{tpu_custom_call.1} parent=11 // pred_check_branch
          %196 = sbr.rel (%p194) target = $region20
        $region19: #{tpu_custom_call.1} parent=11 // pred_region
          _
        $region20: #{tpu_custom_call.1} parent=11 // pred_fallthru
          _
        // Predicated region
        $region21: #{tpu_custom_call.1} parent=11 // pred_check
          %p197 = pneg %p108
        $region22: #{tpu_custom_call.1} parent=11 // pred_check_branch
          %199 = sbr.rel (%p197) target = $region24
        $region23: #{tpu_custom_call.1} parent=11 // pred_region
          _
        $region24: #{tpu_custom_call.1} parent=11 // pred_fallthru
          _
        // Predicated region
        $region25: #{tpu_custom_call.1} parent=11 // pred_check
          %p200 = pneg %p129
        $region26: #{tpu_custom_call.1} parent=11 // pred_check_branch
          %202 = sbr.rel (%p200) target = $region28
        $region27: #{tpu_custom_call.1} parent=11 // pred_region
          _
        $region28: #{tpu_custom_call.1} parent=11 // pred_fallthru
          _
        // Predicated region
        $region29: #{tpu_custom_call.1} parent=11 // pred_check
          %p203 = pneg %p150
        $region30: #{tpu_custom_call.1} parent=11 // pred_check_branch
          %205 = sbr.rel (%p203) target = $region32
        $region31: #{tpu_custom_call.1} parent=11 // pred_region
          _
        $region32: #{tpu_custom_call.1} parent=11 // pred_fallthru
          _
      $region12: #{tpu_custom_call.1} parent=5 // pred_fallthru
        _
      %p206 = scmp.lt.s32.totalorder %s19, 2
      // Predicated region
      $region33: #{tpu_custom_call.1} parent=5 // pred_check
        %p207 = pneg %p206
      $region34: #{tpu_custom_call.1} parent=5 // pred_check_branch
        %209 = sbr.rel (%p207) target = $region36
      $region35: #{tpu_custom_call.1} parent=5 // pred_region
        // Predicated region
        $region37: #{tpu_custom_call.1} parent=35 // pred_check
          %p210 = pneg %p39
        $region38: #{tpu_custom_call.1} parent=35 // pred_check_branch
          %212 = sbr.rel (%p210) target = $region40
        $region39: #{tpu_custom_call.1} parent=35 // pred_region
          %s213 = sand.u32 %s29, 1
          %s214 = scalar_lea.sflag [#allocation4], %s213
          %s215 = sand.u32 %s29, 1
          %s216 = smul.addr %s215, 16
          %s217 = scalar_lea.vmem [#allocation3], %s216
          %s219 = ssub.s32 256, 256
          %220 = vsyncadd %s214, %s219
          %s221 = smul.addr %s19, 2
          %s222 = smul.addr %s221, 128
          %s223 = scalar_lea.hbm %s0, %s222
          %s225 = sshll.u32 %s217, 4
          %s226 = int_to_ptr.vmem [resolvable:$true] %s225
          %228 = dma.hbm_to_vmem [thread:$0]  %s223, 256, %s226, %s214
        $region40: #{tpu_custom_call.1} parent=35 // pred_fallthru
          _
      $region36: #{tpu_custom_call.1} parent=5 // pred_fallthru
        _
      %p229 = scmp.le.s32.totalorder 1, %s19
      %p230 = scmp.lt.s32.totalorder %s19, 3
      %p231 = pnand %p229, %p230
      %p232 = pneg %p231
      // Predicated region
      $region41: #{tpu_custom_call.1} parent=5 // pred_check
        _
      $region42: #{tpu_custom_call.1} parent=5 // pred_check_branch
        %234 = sbr.rel (%p231) target = $region44
      $region43: #{tpu_custom_call.1} parent=5 // pred_region
        %s235 = ssub.s32 %s19, 1
        %s236 = sand.u32 %s32, 1
        %s237 = scalar_lea.sflag [#allocation4], %s236
        %s238 = sand.u32 %s32, 1
        %s239 = smul.addr %s238, 16
        %s240 = scalar_lea.vmem [#allocation3], %s239
        // Predicated region
        $region45: #{tpu_custom_call.1} parent=43 // pred_check
          %p241 = pneg %p45
        $region46: #{tpu_custom_call.1} parent=43 // pred_check_branch
          %243 = sbr.rel (%p241) target = $region48
        $region47: #{tpu_custom_call.1} parent=43 // pred_region
          %244 = dma.done %s237, 256
        $region48: #{tpu_custom_call.1} parent=43 // pred_fallthru
          _
        %s245 = sand.u32 %s32, 1
        %s246 = scalar_lea.sflag [#allocation4], %s245
        %s247 = sand.u32 %s32, 1
        %s248 = smul.addr %s247, 16
        %s249 = scalar_lea.vmem [#allocation3], %s248
        %p250 = pneg %p45
        %p251 = pneg %p42
        %p252 = pneg %p66
        %p253 = pneg %p63
        %p254 = pneg %p87
        %p255 = pneg %p84
        %p256 = pneg %p108
        %p257 = pneg %p105
        %p258 = pneg %p129
        %p259 = pneg %p126
        %p260 = pneg %p150
        %p261 = pneg %p147
        %p262 = pneg %p176
        %p263 = pneg %p173
        %s264 = sand.u32 %s163, 1
        %s265 = scalar_lea.sflag [#allocation5], %s264
        %s266 = sand.u32 %s163, 1
        %s267 = smul.addr %s266, 16
        %s268 = scalar_lea.vmem [#allocation6], %s267
        %v269 = vld [vmem:[%s240] sm:$0xff]
        %v270 = vld [vmem:[%s240 + $0x8] sm:$0xff]
        %v271 = vlaneseq
        %v272 = vand.u32 %v271, 127
        %v273 = vadd.s32 %v272, 128
        %v274 = vand.u32 %v272, 15
        %v275 = vand.u32 %v273, 15
        %vm276 = vcmp.ge.s32.totalorder %v272, 16
        %vm277 = vcmp.ge.s32.totalorder %v273, 16
        %vm278 = vcmp.lt.s32.totalorder %v272, 240
        %vm279 = vcmp.lt.s32.totalorder %v273, 240
        %vm280 = vcmp.ge.s32.totalorder %v274, 1
        %vm281 = vcmp.ge.s32.totalorder %v275, 1
        %vm282 = vcmp.lt.s32.totalorder %v274, 15
        %vm283 = vcmp.lt.s32.totalorder %v275, 15
        %284 = vrot.lane.b32.xlu0 %v269, 17
        %v285 = vpop.permute.xlu0 %284
        %286 = vrot.lane.b32.xlu0 %v270, 17
        %v287 = vpop.permute.xlu0 %286
        %vm288 = vcmp.lt.s32.totalorder %v272, 17
        %v289 = vsel %vm288, %v285, %v287
        %v290 = vsel %vm288, %v287, %v285
        %vm291 = vmand %vm276, %vm280
        %vm292 = vmand %vm277, %vm281
        %v293 = vsel %vm291, %v290, 0.0
        %v294 = vsel %vm292, %v289, 0.0
        %v295 = vld [vmem:[%s1] sm:$0xff]
        %297 = vset.pattern.permute.xlu0 0
        %298 = vperm.xlu0 %297, %v295
        %v299 = vpop.permute.xlu0 %298
        %v301 = vmul.f32 %v293, %v299
        %v302 = vmul.f32 %v294, %v299
        %v303 = vadd.f32 %v301, 0.0
        %v304 = vadd.f32 %v302, 0.0
        %305 = vrot.lane.b32.xlu0 %v269, 16
        %v306 = vpop.permute.xlu0 %305
        %307 = vrot.lane.b32.xlu0 %v270, 16
        %v308 = vpop.permute.xlu0 %307
        %vm309 = vcmp.lt.s32.totalorder %v272, 16
        %v310 = vsel %vm309, %v306, %v308
        %v311 = vsel %vm309, %v308, %v306
        %v312 = vsel %vm276, %v311, 0.0
        %v313 = vsel %vm277, %v310, 0.0
        %314 = vset.pattern.permute.xlu0 1
        %315 = vperm.xlu0 %314, %v295
        %v316 = vpop.permute.xlu0 %315
        %v318 = vmul.f32 %v312, %v316
        %v319 = vmul.f32 %v313, %v316
        %v320 = vadd.f32 %v303, %v318
        %v321 = vadd.f32 %v304, %v319
        %322 = vrot.lane.b32.xlu0 %v269, 15
        %v323 = vpop.permute.xlu0 %322
        %324 = vrot.lane.b32.xlu0 %v270, 15
        %v325 = vpop.permute.xlu0 %324
        %vm326 = vcmp.lt.s32.totalorder %v272, 15
        %v327 = vsel %vm326, %v323, %v325
        %v328 = vsel %vm326, %v325, %v323
        %vm329 = vmand %vm276, %vm282
        %vm330 = vmand %vm277, %vm283
        %v331 = vsel %vm329, %v328, 0.0
        %v332 = vsel %vm330, %v327, 0.0
        %333 = vset.pattern.permute.xlu0 2
        %334 = vperm.xlu0 %333, %v295
        %v335 = vpop.permute.xlu0 %334
        %v337 = vmul.f32 %v331, %v335
        %v338 = vmul.f32 %v332, %v335
        %v339 = vadd.f32 %v320, %v337
        %v340 = vadd.f32 %v321, %v338
        %341 = vrot.lane.b32.xlu0 %v269, 1
        %v342 = vpop.permute.xlu0 %341
        %343 = vrot.lane.b32.xlu0 %v270, 1
        %v344 = vpop.permute.xlu0 %343
        %vm345 = vcmp.lt.s32.totalorder %v272, 1
        %v346 = vsel %vm345, %v342, %v344
        %v347 = vsel %vm345, %v344, %v342
        %v348 = vsel %vm280, %v347, 0.0
        %v349 = vsel %vm281, %v346, 0.0
        %350 = vset.pattern.permute.xlu0 3
        %351 = vperm.xlu0 %350, %v295
        %v352 = vpop.permute.xlu0 %351
        %v354 = vmul.f32 %v348, %v352
        %v355 = vmul.f32 %v349, %v352
        %v356 = vadd.f32 %v339, %v354
        %v357 = vadd.f32 %v340, %v355
        %358 = vset.pattern.permute.xlu0 4
        %359 = vperm.xlu0 %358, %v295
        %v360 = vpop.permute.xlu0 %359
        %v362 = vmul.f32 %v269, %v360
        %v363 = vmul.f32 %v270, %v360
        %v364 = vadd.f32 %v356, %v362
        %v365 = vadd.f32 %v357, %v363
        %366 = vrot.lane.b32.xlu0 %v269, 127
        %v367 = vpop.permute.xlu0 %366
        %368 = vrot.lane.b32.xlu0 %v270, 127
        %v369 = vpop.permute.xlu0 %368
        %vm370 = vcmp.lt.s32.totalorder %v272, 127
        %v371 = vsel %vm370, %v367, %v369
        %v372 = vsel %vm370, %v369, %v367
        %v373 = vsel %vm282, %v371, 0.0
        %v374 = vsel %vm283, %v372, 0.0
        %375 = vset.pattern.permute.xlu0 5
        %376 = vperm.xlu0 %375, %v295
        %v377 = vpop.permute.xlu0 %376
        %v379 = vmul.f32 %v373, %v377
        %v380 = vmul.f32 %v374, %v377
        %v381 = vadd.f32 %v364, %v379
        %v382 = vadd.f32 %v365, %v380
        %383 = vrot.lane.b32.xlu0 %v269, 113
        %v384 = vpop.permute.xlu0 %383
        %385 = vrot.lane.b32.xlu0 %v270, 113
        %v386 = vpop.permute.xlu0 %385
        %vm387 = vcmp.lt.s32.totalorder %v272, 113
        %v388 = vsel %vm387, %v384, %v386
        %v389 = vsel %vm387, %v386, %v384
        %vm390 = vmand %vm278, %vm280
        %vm391 = vmand %vm279, %vm281
        %v392 = vsel %vm390, %v388, 0.0
        %v393 = vsel %vm391, %v389, 0.0
        %394 = vset.pattern.permute.xlu0 6
        %395 = vperm.xlu0 %394, %v295
        %v396 = vpop.permute.xlu0 %395
        %v398 = vmul.f32 %v392, %v396
        %v399 = vmul.f32 %v393, %v396
        %v400 = vadd.f32 %v381, %v398
        %v401 = vadd.f32 %v382, %v399
        %402 = vrot.lane.b32.xlu0 %v269, 112
        %v403 = vpop.permute.xlu0 %402
        %404 = vrot.lane.b32.xlu0 %v270, 112
        %v405 = vpop.permute.xlu0 %404
        %vm406 = vcmp.lt.s32.totalorder %v272, 112
        %v407 = vsel %vm406, %v403, %v405
        %v408 = vsel %vm406, %v405, %v403
        %v409 = vsel %vm278, %v407, 0.0
        %v410 = vsel %vm279, %v408, 0.0
        %411 = vset.pattern.permute.xlu0 7
        %412 = vperm.xlu0 %411, %v295
        %v413 = vpop.permute.xlu0 %412
        %v415 = vmul.f32 %v409, %v413
        %v416 = vmul.f32 %v410, %v413
        %v417 = vadd.f32 %v400, %v415
        %v418 = vadd.f32 %v401, %v416
        %419 = vrot.lane.b32.xlu0 %v269, 111
        %v420 = vpop.permute.xlu0 %419
        %421 = vrot.lane.b32.xlu0 %v270, 111
        %v422 = vpop.permute.xlu0 %421
        %vm423 = vcmp.lt.s32.totalorder %v272, 111
        %v424 = vsel %vm423, %v420, %v422
        %v425 = vsel %vm423, %v422, %v420
        %vm426 = vmand %vm278, %vm282
        %vm427 = vmand %vm279, %vm283
        %v428 = vsel %vm426, %v424, 0.0
        %v429 = vsel %vm427, %v425, 0.0
        %430 = vset.pattern.permute.xlu0 8
        %431 = vperm.xlu0 %430, %v295
        %v432 = vpop.permute.xlu0 %431
        %v434 = vmul.f32 %v428, %v432
        %v435 = vmul.f32 %v429, %v432
        %v436 = vadd.f32 %v417, %v434
        %v437 = vadd.f32 %v418, %v435
        %v438 = vld [vmem:[%s2] sm:$0xff]
        %440 = vset.pattern.permute.xlu0 0
        %441 = vperm.xlu0 %440, %v438
        %v442 = vpop.permute.xlu0 %441
        %v444 = vadd.f32 %v436, %v442
        %v445 = vadd.f32 %v437, %v442
        %v446 = vmax.f32 %v444, 0.0
        %v447 = vmax.f32 %v445, 0.0
        %v448 = vlaneseq
        %v449 = vshrl.u32 %v448, 7
        %v450 = vsub.s32 0, %v449
        %v451 = vrot.slane %v446, %v450
        %v452 = vlaneseq
        %v453 = vshrl.u32 %v452, 7
        %v454 = vsub.s32 0, %v453
        %v455 = vrot.slane %v447, %v454
        %v456 = vld [vmem:[%s3] sm:$0xff]
        %458 = vset.pattern.permute.xlu0 0
        %459 = vperm.xlu0 %458, %v456
        %v460 = vpop.permute.xlu0 %459
        %v462 = vmul.f32 %v460, %v451
        %v463 = vmul.f32 %v460, %v455
        %v464 = vadd.f32 %v462, 0.0
        %v465 = vadd.f32 %v463, 0.0
        %v466 = vlaneseq
        %v467 = vshrl.u32 %v466, 7
        %v468 = vsub.s32 1, %v467
        %v469 = vrot.slane %v446, %v468
        %v470 = vlaneseq
        %v471 = vshrl.u32 %v470, 7
        %v472 = vsub.s32 1, %v471
        %v473 = vrot.slane %v447, %v472
        %474 = vset.pattern.permute.xlu0 1
        %475 = vperm.xlu0 %474, %v456
        %v476 = vpop.permute.xlu0 %475
        %v478 = vmul.f32 %v476, %v469
        %v479 = vmul.f32 %v476, %v473
        %v480 = vadd.f32 %v464, %v478
        %v481 = vadd.f32 %v465, %v479
        %v482 = vlaneseq
        %v483 = vshrl.u32 %v482, 7
        %v484 = vsub.s32 2, %v483
        %v485 = vrot.slane %v446, %v484
        %v486 = vlaneseq
        %v487 = vshrl.u32 %v486, 7
        %v488 = vsub.s32 2, %v487
        %v489 = vrot.slane %v447, %v488
        %490 = vset.pattern.permute.xlu0 2
        %491 = vperm.xlu0 %490, %v456
        %v492 = vpop.permute.xlu0 %491
        %v494 = vmul.f32 %v492, %v485
        %v495 = vmul.f32 %v492, %v489
        %v496 = vadd.f32 %v480, %v494
        %v497 = vadd.f32 %v481, %v495
        %v498 = vlaneseq
        %v499 = vshrl.u32 %v498, 7
        %v500 = vsub.s32 3, %v499
        %v501 = vrot.slane %v446, %v500
        %v502 = vlaneseq
        %v503 = vshrl.u32 %v502, 7
        %v504 = vsub.s32 3, %v503
        %v505 = vrot.slane %v447, %v504
        %506 = vset.pattern.permute.xlu0 3
        %507 = vperm.xlu0 %506, %v456
        %v508 = vpop.permute.xlu0 %507
        %v510 = vmul.f32 %v508, %v501
        %v511 = vmul.f32 %v508, %v505
        %v512 = vadd.f32 %v496, %v510
        %v513 = vadd.f32 %v497, %v511
        %v514 = vlaneseq
        %v515 = vshrl.u32 %v514, 7
        %v516 = vsub.s32 4, %v515
        %v517 = vrot.slane %v446, %v516
        %v518 = vlaneseq
        %v519 = vshrl.u32 %v518, 7
        %v520 = vsub.s32 4, %v519
        %v521 = vrot.slane %v447, %v520
        %522 = vset.pattern.permute.xlu0 4
        %523 = vperm.xlu0 %522, %v456
        %v524 = vpop.permute.xlu0 %523
        %v526 = vmul.f32 %v524, %v517
        %v527 = vmul.f32 %v524, %v521
        %v528 = vadd.f32 %v512, %v526
        %v529 = vadd.f32 %v513, %v527
        %v530 = vlaneseq
        %v531 = vshrl.u32 %v530, 7
        %v532 = vsub.s32 5, %v531
        %v533 = vrot.slane %v446, %v532
        %v534 = vlaneseq
        %v535 = vshrl.u32 %v534, 7
        %v536 = vsub.s32 5, %v535
        %v537 = vrot.slane %v447, %v536
        %538 = vset.pattern.permute.xlu0 5
        %539 = vperm.xlu0 %538, %v456
        %v540 = vpop.permute.xlu0 %539
        %v542 = vmul.f32 %v540, %v533
        %v543 = vmul.f32 %v540, %v537
        %v544 = vadd.f32 %v528, %v542
        %v545 = vadd.f32 %v529, %v543
        %v546 = vlaneseq
        %v547 = vshrl.u32 %v546, 7
        %v548 = vsub.s32 6, %v547
        %v549 = vrot.slane %v446, %v548
        %v550 = vlaneseq
        %v551 = vshrl.u32 %v550, 7
        %v552 = vsub.s32 6, %v551
        %v553 = vrot.slane %v447, %v552
        %554 = vset.pattern.permute.xlu0 6
        %555 = vperm.xlu0 %554, %v456
        %v556 = vpop.permute.xlu0 %555
        %v558 = vmul.f32 %v556, %v549
        %v559 = vmul.f32 %v556, %v553
        %v560 = vadd.f32 %v544, %v558
        %v561 = vadd.f32 %v545, %v559
        %v562 = vlaneseq
        %v563 = vshrl.u32 %v562, 7
        %v564 = vsub.s32 7, %v563
        %v565 = vrot.slane %v446, %v564
        %v566 = vlaneseq
        %v567 = vshrl.u32 %v566, 7
        %v568 = vsub.s32 7, %v567
        %v569 = vrot.slane %v447, %v568
        %570 = vset.pattern.permute.xlu0 7
        %571 = vperm.xlu0 %570, %v456
        %v572 = vpop.permute.xlu0 %571
        %v574 = vmul.f32 %v572, %v565
        %v575 = vmul.f32 %v572, %v569
        %v576 = vadd.f32 %v560, %v574
        %v577 = vadd.f32 %v561, %v575
        %v578 = vld [vmem:[%s4] sm:$0xff]
        %580 = vset.pattern.permute.xlu0 0
        %581 = vperm.xlu0 %580, %v578
        %v582 = vpop.permute.xlu0 %581
        %v584 = vadd.f32 %v576, %v582
        %v585 = vadd.f32 %v577, %v582
        %s586 = sld [smem:[#allocation2]]
        %v587 = vstv %s586
        %v588 = vmul.f32 %v587, %v269
        %v589 = vmul.f32 %v587, %v270
        %v590 = vadd.f32 %v584, %v588
        %v591 = vadd.f32 %v585, %v589
        %592 = vst [vmem:[%s268] sm:$0xff] %v590
        %593 = vst [vmem:[%s268 + $0x8] sm:$0xff] %v591
        %s594 = sand.u32 %s163, 1
        %s595 = scalar_lea.sflag [#allocation5], %s594
        %s596 = sand.u32 %s163, 1
        %s597 = smul.addr %s596, 16
        %s598 = scalar_lea.vmem [#allocation6], %s597
        // Predicated region
        $region49: #{tpu_custom_call.1} parent=43 // pred_check
          %p599 = pneg %p173
        $region50: #{tpu_custom_call.1} parent=43 // pred_check_branch
          %601 = sbr.rel (%p599) target = $region52
        $region51: #{tpu_custom_call.1} parent=43 // pred_region
          %s603 = ssub.s32 256, 256
          %604 = vsyncadd %s595, %s603
          %s605 = smul.addr %s24, 2
          %s606 = smul.addr %s605, 128
          %s607 = scalar_lea.hbm %s6, %s606
          %s609 = sshll.u32 %s598, 4
          %s610 = int_to_ptr.vmem [resolvable:$true] %s609
          %612 = dma.vmem_to_hbm [thread:$0]  %s610, 256, %s607, %s595
        $region52: #{tpu_custom_call.1} parent=43 // pred_fallthru
          _
      $region44: #{tpu_custom_call.1} parent=5 // pred_fallthru
        _
      %p613 = scmp.le.s32.totalorder 2, %s19
      // Predicated region
      $region53: #{tpu_custom_call.1} parent=5 // pred_check
        %p614 = pneg %p613
      $region54: #{tpu_custom_call.1} parent=5 // pred_check_branch
        %616 = sbr.rel (%p614) target = $region56
      $region55: #{tpu_custom_call.1} parent=5 // pred_region
        %s617 = ssub.s32 %s19, 2
        // Predicated region
        $region57: #{tpu_custom_call.1} parent=55 // pred_check
          %p618 = pneg %p179
        $region58: #{tpu_custom_call.1} parent=55 // pred_check_branch
          %620 = sbr.rel (%p618) target = $region60
        $region59: #{tpu_custom_call.1} parent=55 // pred_region
          %s621 = sand.u32 %s164, 1
          %s622 = scalar_lea.sflag [#allocation5], %s621
          %s623 = sand.u32 %s164, 1
          %s624 = smul.addr %s623, 16
          %s625 = scalar_lea.vmem [#allocation6], %s624
          %626 = dma.done %s622, 256
        $region60: #{tpu_custom_call.1} parent=55 // pred_fallthru
          _
      $region56: #{tpu_custom_call.1} parent=5 // pred_fallthru
        _
    $region6: #{tpu_custom_call.1} parent=1 // loop_footer
      %s23 = sadd.s32 1, %s19
    $region7: #{tpu_custom_call.1} parent=1 // loop_footer_branch
      %18 = sbr.rel target = $region3
    $region8: #{tpu_custom_call.1} parent=1 // loop_exit
      _
    %627 = vsyncpa [#allocation4], 1
    %s628 = scalar_lea.sflag [#allocation4], 1
    %629 = vsyncpa %s628, 1
    %630 = vsyncpa [#allocation5], 1
    %s631 = scalar_lea.sflag [#allocation5], 1
    %632 = vsyncpa %s631, 1

</llo_original>
